<compile_context>
chip_gen: v7x
topology: tpu7x:2x2x1
jax: 0.10.0
libtpu: 0.0.40
codegen_flags: <defaults>
</compile_context>

<pallas_src>
import functools

import jax
import jax.numpy as jnp
from jax.experimental import pallas as pl
from jax.experimental.pallas import tpu as pltpu


def _ls_ce_kernel(x_ref, tgt_ref, out_ref, *, smoothing, confidence, n_total):
    # x_ref:   (TN, C) logits block (any float dtype; upcast to f32 here)
    # tgt_ref: (TN, 1) int32 class ids
    # out_ref: (TN, 1) f32 per-sample smoothed loss (padded rows written as 0)
    x = x_ref[...].astype(jnp.float32)                              # (TN, C)
    tn, c = x.shape

    # Row-wise logsumexp (numerically stable). exp(x - m) is the only extra
    # full-size (TN, C) temporary besides x itself.
    m = jnp.max(x, axis=-1, keepdims=True)                          # (TN, 1)
    s = jnp.sum(jnp.exp(x - m), axis=-1, keepdims=True)             # (TN, 1)
    lse = jnp.log(s) + m                                            # (TN, 1)

    # Gather x[row, target[row]] via a select + row reduction (no f32 one-hot).
    # Note: out-of-range targets match nothing -> nll == lse (no error, like
    # the original single-block kernel; PyTorch's gather would raise).
    tgt = tgt_ref[...]                                              # (TN, 1)
    col = jax.lax.broadcasted_iota(jnp.int32, (tn, c), 1)           # (TN, C)
    x_tgt = jnp.sum(jnp.where(col == tgt, x, 0.0), axis=-1, keepdims=True)
    x_mean = jnp.sum(x, axis=-1, keepdims=True) * (1.0 / c)

    nll_loss = lse - x_tgt          # = -log_softmax(x)[target]
    smooth_loss = lse - x_mean      # = -mean(log_softmax(x), axis=-1)
    per_sample = confidence * nll_loss + smoothing * smooth_loss    # (TN, 1)

    # Zero out rows that are padding of the last (partial) batch tile so the
    # wrapper's sum/N is exact.
    row = pl.program_id(0) * tn + jax.lax.broadcasted_iota(jnp.int32, (tn, 1), 0)
    out_ref[...] = jnp.where(row < n_total, per_sample, 0.0)


def _round_up(v, m):
    return (v + m - 1) // m * m


def _choose_row_tile(n, c):
    # Keep the f32 working block around ~2 MiB: double-buffered inputs plus the
    # ~2 live (TN, C) f32 temporaries stay well inside the 32 MiB scoped VMEM
    # default on every generation (including v7x's 64 MiB physical VMEM).
    target_bytes = 2 * 1024 * 1024
    tn = target_bytes // (c * 4)
    tn = max(8, min(1024, (tn // 8) * 8))
    return min(tn, _round_up(n, 8))


def label_smoothing_cross_entropy(x, target, smoothing=0.1):
    """Pallas implementation of LabelSmoothingCrossEntropy.forward.

    x:      (N, C) float logits (f32 or bf16; bf16 is streamed as-is and upcast
            inside the kernel -> half the HBM traffic for this HBM-bound kernel)
    target: (N,)   int class indices
    returns scalar f32 loss
    """
    assert smoothing < 1.0
    confidence = 1.0 - smoothing
    n, c = x.shape
    tn = _choose_row_tile(n, c)
    grid = pl.cdiv(n, tn)
    n_pad = grid * tn

    tgt2d = target.astype(jnp.int32).reshape(n, 1)

    kernel = functools.partial(
        _ls_ce_kernel,
        smoothing=float(smoothing),
        confidence=float(confidence),
        n_total=n,
    )

    # TODO(synk): for vocab-scale C (tens of thousands+), additionally tile the
    # class dimension with an online-softmax (running max/sum scratch) so a row
    # tile never exceeds VMEM; not needed for classification-sized C.
    per_sample = pl.pallas_call(
        kernel,
        out_shape=jax.ShapeDtypeStruct((n_pad, 1), jnp.float32),
        grid=(grid,),
        in_specs=[
            pl.BlockSpec((tn, c), lambda i: (i, 0)),   # (TN, C) logits tile
            pl.BlockSpec((tn, 1), lambda i: (i, 0)),   # (TN, 1) targets tile
        ],
        out_specs=pl.BlockSpec((tn, 1), lambda i: (i, 0)),
        compiler_params=pltpu.CompilerParams(
            dimension_semantics=("parallel",),          # data-parallel row tiles (2 TCs on v7x)
        ),
    )(x, tgt2d)

    # Padded rows were written as 0 -> divide by the true batch size.
    return jnp.sum(per_sample) / n


if __name__ == "__main__":
    key = jax.random.PRNGKey(0)
    kx, kt = jax.random.split(key)

    N, C = 8, 32  # batch=8 samples, 32 classes
    x = jax.random.normal(kx, (N, C), dtype=jnp.float32)
    target = jax.random.randint(kt, (N,), 0, C, dtype=jnp.int32)

    loss = label_smoothing_cross_entropy(x, target, smoothing=0.1)
    jax.block_until_ready(loss)

    # Reference check in plain JAX (same math as the PyTorch module).
    log_prob = jax.nn.log_softmax(x, axis=-1)
    nll = -jnp.take_along_axis(log_prob, target[:, None], axis=-1)[:, 0]
    smooth = -jnp.mean(log_prob, axis=-1)
    ref = jnp.mean(0.9 * nll + 0.1 * smooth)

    assert jnp.allclose(loss, ref, atol=1e-5, rtol=1e-5), (loss, ref)
    print("KERNEL_OK")
</pallas_src>

<mosaic_0001>
module attributes {stable_mosaic.version = 11 : i64} {
  func.func @_ls_ce_kernel(%arg0: i32, %arg1: memref<8x32xf32, #tpu.memory_space<vmem>>, %arg2: memref<8x1xi32, #tpu.memory_space<vmem>>, %arg3: memref<8x1xf32, #tpu.memory_space<vmem>>) attributes {dimension_semantics = [#tpu.dimension_semantics<parallel>], iteration_bounds = array<i64: 1>, scalar_prefetch = 0 : i64, scratch_operands = 0 : i64, tpu.core_type = #tpu.core_type<tc>, window_params = [{transform_indices = @transform_0, window_bounds = array<i64: 8, 32>}, {transform_indices = @transform_1, window_bounds = array<i64: 8, 1>}, {transform_indices = @transform_2, window_bounds = array<i64: 8, 1>}]} {
    %c0 = arith.constant 0 : index
    %c0_0 = arith.constant 0 : index
    %0 = vector.load %arg1[%c0, %c0_0] : memref<8x32xf32, #tpu.memory_space<vmem>>, vector<8x32xf32>
    %cst = arith.constant dense<0xFF800000> : vector<8xf32>
    %1 = vector.multi_reduction <maximumf>, %0, %cst [1] : vector<8x32xf32> to vector<8xf32>
    %2 = vector.shape_cast %1 : vector<8xf32> to vector<8x1xf32>
    %3 = vector.broadcast %2 : vector<8x1xf32> to vector<8x32xf32>
    %4 = arith.subf %0, %3 : vector<8x32xf32>
    %5 = math.exp %4 : vector<8x32xf32>
    %cst_1 = arith.constant dense<0.000000e+00> : vector<8xf32>
    %6 = vector.multi_reduction <add>, %5, %cst_1 [1] : vector<8x32xf32> to vector<8xf32>
    %7 = vector.shape_cast %6 : vector<8xf32> to vector<8x1xf32>
    %8 = math.log %7 : vector<8x1xf32>
    %9 = arith.addf %8, %2 : vector<8x1xf32>
    %c0_2 = arith.constant 0 : index
    %c0_3 = arith.constant 0 : index
    %10 = vector.load %arg2[%c0_2, %c0_3] : memref<8x1xi32, #tpu.memory_space<vmem>>, vector<8x1xi32>
    %11 = tpu.iota {dimensions = array<i32: 1>} : vector<8x32xi32>
    %12 = vector.broadcast %10 : vector<8x1xi32> to vector<8x32xi32>
    %13 = arith.cmpi eq, %11, %12 : vector<8x32xi32>
    %cst_4 = arith.constant 0.000000e+00 : f32
    %14 = vector.broadcast %cst_4 : f32 to vector<8x32xf32>
    %15 = arith.select %13, %0, %14 : vector<8x32xi1>, vector<8x32xf32>
    %cst_5 = arith.constant dense<0.000000e+00> : vector<8xf32>
    %16 = vector.multi_reduction <add>, %15, %cst_5 [1] : vector<8x32xf32> to vector<8xf32>
    %17 = vector.shape_cast %16 : vector<8xf32> to vector<8x1xf32>
    %cst_6 = arith.constant dense<0.000000e+00> : vector<8xf32>
    %18 = vector.multi_reduction <add>, %0, %cst_6 [1] : vector<8x32xf32> to vector<8xf32>
    %19 = vector.shape_cast %18 : vector<8xf32> to vector<8x1xf32>
    %cst_7 = arith.constant 3.125000e-02 : f32
    %20 = vector.broadcast %cst_7 : f32 to vector<8x1xf32>
    %21 = arith.mulf %19, %20 : vector<8x1xf32>
    %22 = arith.subf %9, %17 : vector<8x1xf32>
    %23 = arith.subf %9, %21 : vector<8x1xf32>
    %cst_8 = arith.constant 0.899999976 : f32
    %24 = vector.broadcast %cst_8 : f32 to vector<8x1xf32>
    %25 = arith.mulf %24, %22 : vector<8x1xf32>
    %cst_9 = arith.constant 1.000000e-01 : f32
    %26 = vector.broadcast %cst_9 : f32 to vector<8x1xf32>
    %27 = arith.mulf %26, %23 : vector<8x1xf32>
    %28 = arith.addf %25, %27 : vector<8x1xf32>
    %c8_i32 = arith.constant 8 : i32
    %29 = arith.muli %arg0, %c8_i32 : i32
    %30 = tpu.iota {dimensions = array<i32: 0>} : vector<8x1xi32>
    %31 = vector.broadcast %29 : i32 to vector<8x1xi32>
    %32 = arith.addi %31, %30 : vector<8x1xi32>
    %c8_i32_10 = arith.constant 8 : i32
    %33 = vector.broadcast %c8_i32_10 : i32 to vector<8x1xi32>
    %34 = arith.cmpi slt, %32, %33 : vector<8x1xi32>
    %cst_11 = arith.constant 0.000000e+00 : f32
    %35 = vector.broadcast %cst_11 : f32 to vector<8x1xf32>
    %36 = arith.select %34, %28, %35 : vector<8x1xi1>, vector<8x1xf32>
    %c0_12 = arith.constant 0 : index
    %c0_13 = arith.constant 0 : index
    %37 = vector.load %arg3[%c0_12, %c0_13] : memref<8x1xf32, #tpu.memory_space<vmem>>, vector<8x1xf32>
    tpu.vector_store %arg3[%c0_12, %c0_13], %36 {strides = array<i32>} : memref<8x1xf32, #tpu.memory_space<vmem>>, vector<8x1xf32>,
    return
  }
  func.func @transform_0(%arg0: i32) -> (i32, i32) {
    %c0_i32 = arith.constant 0 : i32
    %c0_i32_0 = arith.constant 0 : i32
    return %arg0, %c0_i32 : i32, i32
  }
  func.func @transform_1(%arg0: i32) -> (i32, i32) {
    %c0_i32 = arith.constant 0 : i32
    %c0_i32_0 = arith.constant 0 : i32
    return %arg0, %c0_i32 : i32, i32
  }
  func.func @transform_2(%arg0: i32) -> (i32, i32) {
    %c0_i32 = arith.constant 0 : i32
    %c0_i32_0 = arith.constant 0 : i32
    return %arg0, %c0_i32 : i32, i32
  }
}

</mosaic_0001>

<llo_original>
// kernel: tpu_custom_call.1
$region0: #{tpu_custom_call.1}
  #allocation0 [shape = 'u32[]', space=smem, size = 0x4, offset = 0x4, fixed_abs, tag = 'smem constant byte address 0x4 - core index']
  #allocation1 [shape = 'u32[144,128]{1,0:T(1,128)}', space=vmem, size = 0x12000, scoped, tag = 'internal scratch']
  %s0 = inlined_call_operand.vmem [shape: f32[8,32], index: 0, kind: input, shape index: {}]
  %s1 = inlined_call_operand.vmem [shape: s32[8,1], index: 1, kind: input, shape index: {}]
  %s2 = inlined_call_operand.vmem [shape: f32[8,1], index: 2, kind: output, shape index: {}]
  %s3 = sld [smem:[#allocation0]]
  $region18: #{tpu_custom_call.1} parent=0
    _
  %s5 = ssub.s32 1, %s3
  %s6 = scalar_select 0, %s5, %s3
  // Predicated region
  $region2: #{tpu_custom_call.1} parent=0 // pred_check
    _
  $region3: #{tpu_custom_call.1} parent=0 // pred_check_branch
    %8 = sbr.rel (0) target = $region5
  $region4: #{tpu_custom_call.1} parent=0 // pred_region
    _
  $region5: #{tpu_custom_call.1} parent=0 // pred_fallthru
    _
  // Predicated region
  $region6: #{tpu_custom_call.1} parent=0 // pred_check
    _
  $region7: #{tpu_custom_call.1} parent=0 // pred_check_branch
    %10 = sbr.rel (0) target = $region9
  $region8: #{tpu_custom_call.1} parent=0 // pred_region
    _
  $region9: #{tpu_custom_call.1} parent=0 // pred_fallthru
    _
  %v11 = vld [vmem:[%s0] sm:$0xff]
  %vm12 = vcmask 261120
  %v13 = vsel %vm12, %v11, -inf
  %14 = vmax.xlane.f32.xlu0 %v13
  %v15 = vpop.xlane.xlu0 %14
  %v16 = vsub.f32 %v11, %v15
  %v17 = vmul.f32 %v16, 1.442695
  %v18 = vpow.pop %v17
  %v19 = vsel %vm12, %v18, 0.0
  %20 = vadd.xlane.f32.xlu0 %v19
  %v21 = vpop.xlane.xlu0 %20
  %v22 = vlog2.pop %v21
  %v23 = vmul.f32 %v22, 0.6931472
  %v24 = vadd.f32 %v23, %v15
  %v25 = vld [vmem:[%s1] sm:$0xff]
  %v26 = vlaneseq
  %v27 = vand.u32 %v26, 127
  %28 = vset.pattern.permute.xlu0 0
  %29 = vperm.xlu0 %28, %v25
  %v30 = vpop.permute.xlu0 %29
  %vm31 = vcmp.eq.s32.totalorder %v27, %v30
  %v32 = vsel %vm31, %v11, 0.0
  %v33 = vsel %vm12, %v32, 0.0
  %34 = vadd.xlane.f32.xlu0 %v33
  %v35 = vpop.xlane.xlu0 %34
  %v36 = vsel %vm12, %v11, 0.0
  %37 = vadd.xlane.f32.xlu0 %v36
  %v38 = vpop.xlane.xlu0 %37
  %v39 = vmul.f32 %v38, 0.03125
  %v40 = vsub.f32 %v24, %v35
  %v41 = vsub.f32 %v24, %v39
  %v42 = vmul.f32 %v40, 0.9
  %v43 = vmul.f32 %v41, 0.1
  %v44 = vadd.f32 %v42, %v43
  %s45 = smul.u32 0, 8
  %v46 = vlaneseq
  %v47 = vshrl.u32 %v46, 7
  %v48 = vstv %s45
  %v49 = vadd.s32 %v48, %v47
  %vm50 = vcmp.lt.s32.totalorder %v49, 8
  %v51 = vsel %vm50, %v44, 0.0
  %vm52 = vcmask 7168
  %53 = vst.msk [vmem:[%s2] sm:$0xff] %vm52, %v51
  // Predicated region
  $region10: #{tpu_custom_call.1} parent=0 // pred_check
    _
  $region11: #{tpu_custom_call.1} parent=0 // pred_check_branch
    %55 = sbr.rel (0) target = $region13
  $region12: #{tpu_custom_call.1} parent=0 // pred_region
    _
  $region13: #{tpu_custom_call.1} parent=0 // pred_fallthru
    _
  // Predicated region
  $region14: #{tpu_custom_call.1} parent=0 // pred_check
    _
  $region15: #{tpu_custom_call.1} parent=0 // pred_check_branch
    %57 = sbr.rel (0) target = $region17
  $region16: #{tpu_custom_call.1} parent=0 // pred_region
    _
  $region17: #{tpu_custom_call.1} parent=0 // pred_fallthru
    _

</llo_original>
